<compile_context>
chip_gen: v5e
topology: v5e:2x2
jax: 0.10.0
libtpu: 0.0.40
codegen_flags: <defaults>
</compile_context>

<pallas_src>
import jax
import jax.numpy as jnp
from jax.experimental import pallas as pl
from jax.experimental.pallas import tpu as pltpu


def dqn_kernel(x_ref, w_ref, b_ref, o_ref):
    # One affine map on the MXU: (tm, d_in)bf16 @ (d_in, d_out)bf16 -> f32 acc.
    acc = jnp.dot(x_ref[...], w_ref[...], preferred_element_type=jnp.float32)
    o_ref[...] = (acc + b_ref[...]).astype(o_ref.dtype)


def fuse_dqn_params(w1, b1, w2, b2):
    """Fold fc1/fc2 into a single affine map.

    Only legal while there is NO activation between fc1 and fc2 (true for the
    reference forward()). Do this once at parameter-load time.

    Returns:
      w_fused: (d_in, d_out) bf16  -- MXU operand
      b_fused: (1, d_out)   f32
    """
    w = jnp.dot(w1.astype(jnp.float32), w2.astype(jnp.float32))        # (d_in, d_out)
    b = jnp.dot(b1.astype(jnp.float32), w2.astype(jnp.float32)) + b2   # (1, d_out)
    return w.astype(jnp.bfloat16), b.astype(jnp.float32)


def _choose_tile_rows(batch, *, target_rows=4096):
    """Pick the per-step batch tile (sublane dim of the 1-D grid).

    - Large tiles (2K-8K rows) so HBM traffic per step hides the fixed
      per-grid-step pipeline overhead.
    - At least 2 (ideally 4) grid steps when batch >= 16 so the "parallel"
      batch axis can be split across v7x's two TensorCores.
    - Even at 8192 rows the double-buffered x (bf16) + out (f32) tiles are a
      few MiB, comfortably below v7x's 32 MiB scoped-VMEM default.
    """
    if batch < 16:
        return batch                        # tiny batch: single step
    min_steps = 2 if batch < 64 else 4
    tm = min(target_rows, pl.cdiv(batch, min_steps))
    return max(8, (tm // 8) * 8)            # sublane-aligned


def dqn_forward(x, w_fused, b_fused, *, tile_rows=4096):
    """x: (B, d_in); w_fused: (d_in, d_out) bf16; b_fused: (1, d_out) f32.

    Returns float32 Q-values of shape (B, d_out).
    """
    batch, d_in = x.shape
    d_out = w_fused.shape[1]

    # bf16 halves the x HBM read bytes and uses the native bf16 MXU path.
    # (Best case: the producer already emits bf16 activations.)
    if x.dtype != jnp.bfloat16:
        x = x.astype(jnp.bfloat16)
    if w_fused.dtype != jnp.bfloat16:
        w_fused = w_fused.astype(jnp.bfloat16)

    tm = _choose_tile_rows(batch, target_rows=tile_rows)
    grid = (pl.cdiv(batch, tm),)

    return pl.pallas_call(
        dqn_kernel,
        out_shape=jax.ShapeDtypeStruct((batch, d_out), jnp.float32),
        grid=grid,
        in_specs=[
            pl.BlockSpec((tm, d_in), lambda i: (i, 0)),      # batch-tiled x
            pl.BlockSpec((d_in, d_out), lambda i: (0, 0)),   # weights resident
            pl.BlockSpec((1, d_out), lambda i: (0, 0)),      # bias resident
        ],
        out_specs=pl.BlockSpec((tm, d_out), lambda i: (i, 0)),  # unpadded store
        compiler_params=pltpu.CompilerParams(
            dimension_semantics=("parallel",),               # v7x 2-TC sharding
        ),
    )(x, w_fused, b_fused)


def init_dqn_params(key, input_dim, output_dim, hidden=64, dtype=jnp.float32):
    """PyTorch-style uniform(+/- 1/sqrt(fan_in)) init.

    Weights are stored as (in_features, out_features), i.e. transposed vs.
    torch's nn.Linear weight layout.
    """
    k1, k2, k3, k4 = jax.random.split(key, 4)
    bound1 = 1.0 / jnp.sqrt(input_dim)
    bound2 = 1.0 / jnp.sqrt(hidden)
    w1 = jax.random.uniform(k1, (input_dim, hidden), dtype, -bound1, bound1)
    b1 = jax.random.uniform(k2, (1, hidden), dtype, -bound1, bound1)
    w2 = jax.random.uniform(k3, (hidden, output_dim), dtype, -bound2, bound2)
    b2 = jax.random.uniform(k4, (1, output_dim), dtype, -bound2, bound2)
    return w1, b1, w2, b2


if __name__ == "__main__":
    key = jax.random.PRNGKey(0)
    k_x, k_x2, k_p = jax.random.split(key, 3)

    input_dim, output_dim, hidden = 32, 8, 64
    w1, b1, w2, b2 = init_dqn_params(k_p, input_dim, output_dim, hidden)

    # One-time parameter fold (amortized across all forward calls).
    w_f, b_f = fuse_dqn_params(w1, b1, w2, b2)

    def reference(xv):
        # Original (unfused) module math fc2(fc1(x)) in true f32.
        h = jnp.dot(xv, w1, precision=jax.lax.Precision.HIGHEST) + b1
        return jnp.dot(h, w2, precision=jax.lax.Precision.HIGHEST) + b2

    # --- Main check: batch exercises a multi-step grid (tm=16 -> 4 steps). ---
    batch = 64
    x = jax.random.normal(k_x, (batch, input_dim), jnp.float32)
    out = jax.block_until_ready(dqn_forward(x, w_f, b_f))
    assert out.shape == (batch, output_dim)
    assert out.dtype == jnp.float32

    # Tight check vs. the same fused bf16 math done by XLA.
    fused_ref = jnp.dot(
        x.astype(jnp.bfloat16).astype(jnp.float32),
        w_f.astype(jnp.float32),
        precision=jax.lax.Precision.HIGHEST,
    ) + b_f
    assert jnp.allclose(out, fused_ref, atol=1e-4, rtol=1e-4)

    # Loose check vs. the original f32 module math (bf16 operands + FP
    # reassociation from the fc1/fc2 fold).
    assert jnp.allclose(out, reference(x), atol=2e-2, rtol=2e-2)

    # --- Ragged check: B not a multiple of the tile; Pallas masks the
    # boundary-block writeback so real rows must be unaffected. ---
    batch2 = 50
    x2 = jax.random.normal(k_x2, (batch2, input_dim), jnp.float32)
    out2 = jax.block_until_ready(dqn_forward(x2, w_f, b_f))
    assert out2.shape == (batch2, output_dim)
    assert bool(jnp.all(jnp.isfinite(out2)))
    assert jnp.allclose(out2, reference(x2), atol=2e-2, rtol=2e-2)

    print("KERNEL_OK")
</pallas_src>

<mosaic_0001>
module attributes {stable_mosaic.version = 11 : i64} {
  func.func @dqn_kernel(%arg0: i32, %arg1: memref<16x32xbf16, #tpu.memory_space<vmem>>, %arg2: memref<32x8xbf16, #tpu.memory_space<vmem>>, %arg3: memref<1x8xf32, #tpu.memory_space<vmem>>, %arg4: memref<16x8xf32, #tpu.memory_space<vmem>>) attributes {dimension_semantics = [#tpu.dimension_semantics<parallel>], iteration_bounds = array<i64: 4>, scalar_prefetch = 0 : i64, scratch_operands = 0 : i64, tpu.core_type = #tpu.core_type<tc>, window_params = [{transform_indices = @transform_0, window_bounds = array<i64: 16, 32>}, {pipeline_mode = #tpu.pipeline_mode<synchronous>, transform_indices = @transform_1, window_bounds = array<i64: 32, 8>}, {pipeline_mode = #tpu.pipeline_mode<synchronous>, transform_indices = @transform_2, window_bounds = array<i64: 1, 8>}, {transform_indices = @transform_3, window_bounds = array<i64: 16, 8>}]} {
    %c0 = arith.constant 0 : index
    %c0_0 = arith.constant 0 : index
    %0 = vector.load %arg1[%c0, %c0_0] : memref<16x32xbf16, #tpu.memory_space<vmem>>, vector<16x32xbf16>
    %c0_1 = arith.constant 0 : index
    %c0_2 = arith.constant 0 : index
    %1 = vector.load %arg2[%c0_1, %c0_2] : memref<32x8xbf16, #tpu.memory_space<vmem>>, vector<32x8xbf16>
    %cst = arith.constant dense<0.000000e+00> : vector<16x8xf32>
    %2 = tpu.matmul %0, %1, %cst {dimension_numbers = #tpu.dot_dimension_numbers<[1], [0], [0], [1], [0, 0, 1, 1], [], []>} : vector<16x32xbf16>, vector<32x8xbf16>, vector<16x8xf32> -> vector<16x8xf32>
    %c0_3 = arith.constant 0 : index
    %c0_4 = arith.constant 0 : index
    %3 = vector.load %arg3[%c0_3, %c0_4] : memref<1x8xf32, #tpu.memory_space<vmem>>, vector<1x8xf32>
    %4 = vector.broadcast %3 : vector<1x8xf32> to vector<16x8xf32>
    %5 = arith.addf %2, %4 : vector<16x8xf32>
    %c0_5 = arith.constant 0 : index
    %c0_6 = arith.constant 0 : index
    %6 = vector.load %arg4[%c0_5, %c0_6] : memref<16x8xf32, #tpu.memory_space<vmem>>, vector<16x8xf32>
    tpu.vector_store %arg4[%c0_5, %c0_6], %5 {strides = array<i32>} : memref<16x8xf32, #tpu.memory_space<vmem>>, vector<16x8xf32>,
    return
  }
  func.func @transform_0(%arg0: i32) -> (i32, i32) {
    %c0_i32 = arith.constant 0 : i32
    %c0_i32_0 = arith.constant 0 : i32
    return %arg0, %c0_i32 : i32, i32
  }
  func.func @transform_1(%arg0: i32) -> (i32, i32) {
    %c0_i32 = arith.constant 0 : i32
    %c0_i32_0 = arith.constant 0 : i32
    %c0_i32_1 = arith.constant 0 : i32
    return %c0_i32, %c0_i32_0 : i32, i32
  }
  func.func @transform_2(%arg0: i32) -> (i32, i32) {
    %c0_i32 = arith.constant 0 : i32
    %c0_i32_0 = arith.constant 0 : i32
    %c0_i32_1 = arith.constant 0 : i32
    return %c0_i32, %c0_i32_0 : i32, i32
  }
  func.func @transform_3(%arg0: i32) -> (i32, i32) {
    %c0_i32 = arith.constant 0 : i32
    %c0_i32_0 = arith.constant 0 : i32
    return %arg0, %c0_i32 : i32, i32
  }
}

</mosaic_0001>

<llo_original>
// kernel: tpu_custom_call.1
$region0: #{tpu_custom_call.1}
  #allocation0 [shape = 'u32[]', space=smem, size = 0x4, offset = 0x4, fixed_abs, tag = 'smem constant byte address 0x4 - core index']
  #allocation1 [shape = 'u32[72,128]{1,0:T(1,128)}', space=vmem, size = 0x9000, scoped, tag = 'internal scratch']
  %s0 = inlined_call_operand.vmem [shape: bf16[64,32], index: 0, kind: input, shape index: {}]
  %s1 = inlined_call_operand.vmem [shape: bf16[32,8], index: 1, kind: input, shape index: {}]
  %s2 = inlined_call_operand.vmem [shape: f32[1,8], index: 2, kind: input, shape index: {}]
  %s3 = inlined_call_operand.vmem [shape: f32[64,8], index: 3, kind: output, shape index: {}]
  %s4 = sld [smem:[#allocation0]]
  $region45: #{tpu_custom_call.1} parent=0
    _
  %s6 = ssub.s32 1, %s4
  %s7 = scalar_select 0, %s6, %s4
  loop: start=0, step=1, limit=6
  $region2: #{tpu_custom_call.1} parent=0 // loop_pre_header
    _
  $region3: #{tpu_custom_call.1} parent=0 // loop_header
    %s9 = sphi 0, %s13
    %p10 = scmp.ge.s32.totalorder %s9, 6
    %s19 = sphi 0, %s21
    %s22 = sphi 0, %s19
    %s23 = sphi 0, %s22
    %s39 = sphi 0, %s23
    %s43 = sphi 0, %s43
    %s45 = sphi 0, %s43
    %s46 = sphi 0, %s45
    %s60 = sphi 0, %s46
    %s64 = sphi 0, %s64
    %s66 = sphi 0, %s64
    %s67 = sphi 0, %s66
    %s81 = sphi 0, %s67
    %s87 = sphi 0, %s89
    %s90 = sphi 0, %s87
    %s91 = sphi 0, %s90
    %s107 = sphi 0, %s91
  $region4: #{tpu_custom_call.1} parent=0 // loop_header_branch
    %12 = sbr.rel (%p10) target = $region8
  $region5: #{tpu_custom_call.1} parent=0 // loop_body
    %s14 = ssub.s32 %s9, 1
    %s15 = ssub.s32 %s9, 2
    %s16 = sadd.s32 %s9, 1
    %s17 = ssub.s32 %s9, %s16
    %p18 = scmp.eq.s32.totalorder %s17, 0
    %s20 = sadd.s32 %s19, 1
    %s21 = scalar_select %p18, %s19, %s20
    %p24 = pneg %p18
    %p25 = scmp.eq.s32.totalorder %s9, 3
    %p26 = por %p24, %p25
    %p27 = scmp.ne.s32.totalorder %s19, %s22
    %p28 = scmp.eq.s32.totalorder %s9, 0
    %p29 = por %p27, %p28
    %p30 = scmp.ne.s32.totalorder %s19, %s22
    %p31 = scmp.eq.s32.totalorder %s14, 3
    %p32 = por %p30, %p31
    %p33 = scmp.ne.s32.totalorder %s22, %s23
    %p34 = scmp.eq.s32.totalorder %s14, 0
    %p35 = por %p33, %p34
    %p36 = scmp.ne.s32.totalorder %s22, %s23
    %p37 = scmp.eq.s32.totalorder %s15, 3
    %p38 = por %p36, %p37
    %p40 = scmp.ne.s32.totalorder %s23, %s39
    %p41 = scmp.eq.s32.totalorder %s15, 0
    %p42 = por %p40, %p41
    %s44 = sadd.s32 %s43, 1
    %p47 = scmp.eq.s32.totalorder %s9, 3
    %p48 = scmp.ne.s32.totalorder %s43, %s45
    %p49 = scmp.eq.s32.totalorder %s9, 0
    %p50 = por %p48, %p49
    %p51 = scmp.ne.s32.totalorder %s43, %s45
    %p52 = scmp.eq.s32.totalorder %s14, 3
    %p53 = por %p51, %p52
    %p54 = scmp.ne.s32.totalorder %s45, %s46
    %p55 = scmp.eq.s32.totalorder %s14, 0
    %p56 = por %p54, %p55
    %p57 = scmp.ne.s32.totalorder %s45, %s46
    %p58 = scmp.eq.s32.totalorder %s15, 3
    %p59 = por %p57, %p58
    %p61 = scmp.ne.s32.totalorder %s46, %s60
    %p62 = scmp.eq.s32.totalorder %s15, 0
    %p63 = por %p61, %p62
    %s65 = sadd.s32 %s64, 1
    %p68 = scmp.eq.s32.totalorder %s9, 3
    %p69 = scmp.ne.s32.totalorder %s64, %s66
    %p70 = scmp.eq.s32.totalorder %s9, 0
    %p71 = por %p69, %p70
    %p72 = scmp.ne.s32.totalorder %s64, %s66
    %p73 = scmp.eq.s32.totalorder %s14, 3
    %p74 = por %p72, %p73
    %p75 = scmp.ne.s32.totalorder %s66, %s67
    %p76 = scmp.eq.s32.totalorder %s14, 0
    %p77 = por %p75, %p76
    %p78 = scmp.ne.s32.totalorder %s66, %s67
    %p79 = scmp.eq.s32.totalorder %s15, 3
    %p80 = por %p78, %p79
    %p82 = scmp.ne.s32.totalorder %s67, %s81
    %p83 = scmp.eq.s32.totalorder %s15, 0
    %p84 = por %p82, %p83
    %s85 = ssub.s32 %s9, %s16
    %p86 = scmp.eq.s32.totalorder %s85, 0
    %s88 = sadd.s32 %s87, 1
    %s89 = scalar_select %p86, %s87, %s88
    %p92 = pneg %p86
    %p93 = scmp.eq.s32.totalorder %s9, 3
    %p94 = por %p92, %p93
    %p95 = scmp.ne.s32.totalorder %s87, %s90
    %p96 = scmp.eq.s32.totalorder %s9, 0
    %p97 = por %p95, %p96
    %p98 = scmp.ne.s32.totalorder %s87, %s90
    %p99 = scmp.eq.s32.totalorder %s14, 3
    %p100 = por %p98, %p99
    %p101 = scmp.ne.s32.totalorder %s90, %s91
    %p102 = scmp.eq.s32.totalorder %s14, 0
    %p103 = por %p101, %p102
    %p104 = scmp.ne.s32.totalorder %s90, %s91
    %p105 = scmp.eq.s32.totalorder %s15, 3
    %p106 = por %p104, %p105
    %p108 = scmp.ne.s32.totalorder %s91, %s107
    %p109 = scmp.eq.s32.totalorder %s15, 0
    %p110 = por %p108, %p109
    %p111 = scmp.le.s32.totalorder 1, %s9
    %p112 = scmp.lt.s32.totalorder %s9, 5
    %p113 = pnand %p111, %p112
    %p114 = pneg %p113
    // Predicated region
    $region9: #{tpu_custom_call.1} parent=5 // pred_check
      _
    $region10: #{tpu_custom_call.1} parent=5 // pred_check_branch
      %116 = sbr.rel (%p113) target = $region12
    $region11: #{tpu_custom_call.1} parent=5 // pred_region
      %s117 = ssub.s32 %s9, 1
      // Predicated region
      $region13: #{tpu_custom_call.1} parent=11 // pred_check
        %p118 = pneg %p56
      $region14: #{tpu_custom_call.1} parent=11 // pred_check_branch
        %120 = sbr.rel (%p118) target = $region16
      $region15: #{tpu_custom_call.1} parent=11 // pred_region
        _
      $region16: #{tpu_custom_call.1} parent=11 // pred_fallthru
        _
      // Predicated region
      $region17: #{tpu_custom_call.1} parent=11 // pred_check
        %p121 = pneg %p77
      $region18: #{tpu_custom_call.1} parent=11 // pred_check_branch
        %123 = sbr.rel (%p121) target = $region20
      $region19: #{tpu_custom_call.1} parent=11 // pred_region
        _
      $region20: #{tpu_custom_call.1} parent=11 // pred_fallthru
        _
    $region12: #{tpu_custom_call.1} parent=5 // pred_fallthru
      _
    %p124 = scmp.lt.s32.totalorder %s9, 4
    // Predicated region
    $region21: #{tpu_custom_call.1} parent=5 // pred_check
      %p125 = pneg %p124
    $region22: #{tpu_custom_call.1} parent=5 // pred_check_branch
      %127 = sbr.rel (%p125) target = $region24
    $region23: #{tpu_custom_call.1} parent=5 // pred_region
      // Predicated region
      $region25: #{tpu_custom_call.1} parent=23 // pred_check
        %p128 = pneg %p29
      $region26: #{tpu_custom_call.1} parent=23 // pred_check_branch
        %130 = sbr.rel (%p128) target = $region28
      $region27: #{tpu_custom_call.1} parent=23 // pred_region
        %s131 = smul.u32 2, %s9
        %p132 = scmp.lt.s32.totalorder %s131, 7
        %s133 = scalar_select %p132, %s131, 7
        %s134 = smul.addr %s133, 4
        %s135 = scalar_lea.vmem %s0, %s134
        %s136 = smul.u32 2, %s9
      $region28: #{tpu_custom_call.1} parent=23 // pred_fallthru
        _
    $region24: #{tpu_custom_call.1} parent=5 // pred_fallthru
      _
    %p137 = scmp.le.s32.totalorder 1, %s9
    %p138 = scmp.lt.s32.totalorder %s9, 5
    %p139 = pnand %p137, %p138
    %p140 = pneg %p139
    // Predicated region
    $region29: #{tpu_custom_call.1} parent=5 // pred_check
      _
    $region30: #{tpu_custom_call.1} parent=5 // pred_check_branch
      %142 = sbr.rel (%p139) target = $region32
    $region31: #{tpu_custom_call.1} parent=5 // pred_region
      %s143 = ssub.s32 %s9, 1
      %s144 = smul.u32 2, %s14
      %p145 = scmp.lt.s32.totalorder %s144, 7
      %s146 = scalar_select %p145, %s144, 7
      %s147 = smul.addr %s146, 4
      %s148 = scalar_lea.vmem %s0, %s147
      %p149 = pneg %p35
      %p150 = pneg %p32
      %p151 = pneg %p56
      %p152 = pneg %p53
      %p153 = pneg %p77
      %p154 = pneg %p74
      %p155 = pneg %p103
      %p156 = pneg %p100
      %s157 = smul.u32 2, %s14
      %p158 = scmp.lt.s32.totalorder %s157, 7
      %s159 = scalar_select %p158, %s157, 7
      %s160 = smul.addr %s159, 8
      %s161 = scalar_lea.vmem %s3, %s160
      %s162 = smul.u32 2, %s14
      %p163 = scmp.lt.s32.totalorder %s162, 7
      %s164 = scalar_select %p163, %s162, 7
      %s165 = smul.addr %s164, 4
      %s166 = scalar_lea.vmem %s0, %s165
      %s167 = smul.u32 2, %s14
      %s168 = smul.u32 2, %s14
      %p169 = scmp.lt.s32.totalorder %s168, 7
      %s170 = scalar_select %p169, %s168, 7
      %s171 = smul.addr %s170, 8
      %s172 = scalar_lea.vmem %s3, %s171
      %s173 = smul.u32 2, %s14
      %v175 = vld [vmem:[%s166] sm:$0xf]
      %v176 = vld [vmem:[%s166 + $0x4] sm:$0xf]
      %v177 = vld [vmem:[%s1] sm:$0xf]
      %v178 = vld [vmem:[%s1 + $0x4] sm:$0xf]
      %v179 = vld [vmem:[%s1 + $0x8] sm:$0xf]
      %v180 = vld [vmem:[%s1 + $0xc] sm:$0xf]
      %v181 = vld [vmem:[%s2] sm:$0x1]
      %v183 = vperm.slane %v181, 0
      %v187 = vunpack.c.l.b16 %v175
      %v188 = vunpack.c.l.b16 %v176
      %v189 = vpack.c.b16 %v188, %v187
      %v194 = vunpack.c.l.b16 %v177
      %v195 = vunpack.c.l.b16 %v178
      %v196 = vunpack.c.l.b16 %v179
      %v197 = vunpack.c.l.b16 %v180
      %v198 = vpack.c.b16 %v195, %v194
      %v199 = vpack.c.b16 %v197, %v196
      %vm202 = vcmask 261120
      %v204 = vsel %vm202, %v189, 0
      %206 = vmatpush.bf16.msra.mxu0 0
      %207 = vmatpush.bf16.msra.mxu0 0
      %208 = vmatpush.bf16.msra.mxu0 0
      %209 = vmatpush.bf16.msra.mxu0 0
      %210 = vmatpush.bf16.msra.mxu0 0
      %211 = vmatpush.bf16.msra.mxu0 0
      %212 = vmatpush.bf16.msra.mxu0 %v199
      %213 = vmatpush.bf16.msra.mxu0 %v198
      %214 = vmatmul.bf16.gmra.mxu0 %v204
      %v215 = vpop.f32.mrf.mxu0
      %v216 = vadd.f32 %v183, %v215
      %v217 = vpop.f32.mrf.mxu0
      %v218 = vadd.f32 %v183, %v217
      %219 = vdwg.mxu0
      %vm220 = vcmask 64512
      %221 = vst.msk [vmem:[%s172] sm:$0xff] %vm220, %v216
      %222 = vst.msk [vmem:[%s172 + $0x8] sm:$0xff] %vm220, %v218
      %s223 = smul.u32 2, %s14
      %p224 = scmp.lt.s32.totalorder %s223, 7
      %s225 = scalar_select %p224, %s223, 7
      %s226 = smul.addr %s225, 8
      %s227 = scalar_lea.vmem %s3, %s226
      // Predicated region
      $region33: #{tpu_custom_call.1} parent=31 // pred_check
        %p228 = pneg %p100
      $region34: #{tpu_custom_call.1} parent=31 // pred_check_branch
        %230 = sbr.rel (%p228) target = $region36
      $region35: #{tpu_custom_call.1} parent=31 // pred_region
        %s231 = smul.u32 2, %s14
      $region36: #{tpu_custom_call.1} parent=31 // pred_fallthru
        _
    $region32: #{tpu_custom_call.1} parent=5 // pred_fallthru
      _
    %p232 = scmp.le.s32.totalorder 2, %s9
    // Predicated region
    $region37: #{tpu_custom_call.1} parent=5 // pred_check
      %p233 = pneg %p232
    $region38: #{tpu_custom_call.1} parent=5 // pred_check_branch
      %235 = sbr.rel (%p233) target = $region40
    $region39: #{tpu_custom_call.1} parent=5 // pred_region
      %s236 = ssub.s32 %s9, 2
      // Predicated region
      $region41: #{tpu_custom_call.1} parent=39 // pred_check
        %p237 = pneg %p106
      $region42: #{tpu_custom_call.1} parent=39 // pred_check_branch
        %239 = sbr.rel (%p237) target = $region44
      $region43: #{tpu_custom_call.1} parent=39 // pred_region
        %s240 = smul.u32 2, %s15
        %p241 = scmp.lt.s32.totalorder %s240, 7
        %s242 = scalar_select %p241, %s240, 7
        %s243 = smul.addr %s242, 8
        %s244 = scalar_lea.vmem %s3, %s243
      $region44: #{tpu_custom_call.1} parent=39 // pred_fallthru
        _
    $region40: #{tpu_custom_call.1} parent=5 // pred_fallthru
      _
  $region6: #{tpu_custom_call.1} parent=0 // loop_footer
    %s13 = sadd.s32 1, %s9
  $region7: #{tpu_custom_call.1} parent=0 // loop_footer_branch
    %8 = sbr.rel target = $region3
  $region8: #{tpu_custom_call.1} parent=0 // loop_exit
    _

</llo_original>
